<compile_context>
chip_gen: v7x
topology: tpu7x:2x2x1
jax: 0.10.0
libtpu: 0.0.40
codegen_flags: <defaults>
</compile_context>

<pallas_src>
import jax
import jax.numpy as jnp
from jax.experimental import pallas as pl
from jax.experimental.pallas import tpu as pltpu


def _round_up(x, m):
    return ((x + m - 1) // m) * m


def _qkv_kernel(x_ref, wq_ref, bq_ref, wkv_ref, bkv_ref, q_ref, kv_ref):
    x = x_ref[...]                              # (TM, dim), storage dtype
    if x.dtype != wq_ref.dtype:
        # In-VMEM cast (VPU) so the MXU sees matching (e.g. bf16) operands;
        # avoids a separate wrapper-side HBM pass over x.
        x = x.astype(wq_ref.dtype)

    # q = x @ Wq + bq   (f32 accumulation on the MXU)
    q = jnp.dot(x, wq_ref[...], preferred_element_type=jnp.float32)
    q_ref[...] = (q + bq_ref[...].astype(jnp.float32)).astype(q_ref.dtype)

    # kv = x @ Wkv + bkv
    kv = jnp.dot(x, wkv_ref[...], preferred_element_type=jnp.float32)
    kv_ref[...] = (kv + bkv_ref[...].astype(jnp.float32)).astype(kv_ref.dtype)


def qkv_linear_pallas(x, weight, bias, qk_dim, *, tm=512, x_buffers=2,
                      lane_multiple=128):
    """QKVLinear forward.

    x:      (B, N, dim)
    weight: (dim, 2*qk_dim + dim)   -- transposed torch nn.Linear weight (W.T).
            Store in bf16 at model init to use the bf16 MXU path (x is cast
            in-kernel; no wrapper-side cast of x).
    bias:   (2*qk_dim + dim,) or None
    returns (q, kv): (B, N, qk_dim), (B, N, qk_dim + dim)
    """
    B, N, dim = x.shape
    out_total = weight.shape[1]
    kv_dim = out_total - qk_dim
    out_dtype = x.dtype

    if bias is None:
        bias = jnp.zeros((out_total,), dtype=jnp.float32)

    # Lane-dense output panels: round each panel width up to a multiple of 128
    # (use 256 on v6e/v7x-sized problems if you want full MXU N occupancy).
    qk_pad = _round_up(qk_dim, lane_multiple)
    kv_pad = _round_up(kv_dim, lane_multiple)

    # Split (and, if needed, column-pad) the fused weight/bias once in the
    # wrapper -- weight-sized work, conceptually init-time.
    wq, wkv = weight[:, :qk_dim], weight[:, qk_dim:]
    bq, bkv = bias[:qk_dim], bias[qk_dim:]
    if qk_pad != qk_dim:
        wq = jnp.pad(wq, ((0, 0), (0, qk_pad - qk_dim)))
        bq = jnp.pad(bq, (0, qk_pad - qk_dim))
    if kv_pad != kv_dim:
        wkv = jnp.pad(wkv, ((0, 0), (0, kv_pad - kv_dim)))
        bkv = jnp.pad(bkv, (0, kv_pad - kv_dim))
    bq = bq.reshape(1, qk_pad)
    bkv = bkv.reshape(1, kv_pad)

    # Flatten batch*seq into the MXU "M" dimension. No padding of x: the grid
    # uses cdiv and Pallas masks the ragged last block on load/store.
    M = B * N
    x2 = x.reshape(M, dim)
    tm_eff = min(tm, _round_up(M, 8))           # keep sublane-aligned row tiles
    grid = (pl.cdiv(M, tm_eff),)

    w_itemsize = jnp.dtype(weight.dtype).itemsize
    x_itemsize = jnp.dtype(x.dtype).itemsize
    o_itemsize = jnp.dtype(out_dtype).itemsize
    b_itemsize = jnp.dtype(bq.dtype).itemsize

    # VMEM budget: single-buffered resident weights + multi-buffered streamed
    # tiles, generous margin, capped at v7x's 64 MiB per-TensorCore capacity.
    resident = dim * (qk_pad + kv_pad) * w_itemsize + (qk_pad + kv_pad) * b_itemsize
    streamed = (tm_eff * dim * x_itemsize * x_buffers
                + tm_eff * (qk_pad + kv_pad) * o_itemsize * 2)
    vmem_limit = int(min(max(4 * (resident + streamed), 16 * 1024 * 1024),
                         64 * 1024 * 1024))

    cost = pl.CostEstimate(
        flops=2 * M * dim * (qk_pad + kv_pad),
        transcendentals=0,
        bytes_accessed=int(x2.size * x_itemsize
                           + (wq.size + wkv.size) * w_itemsize
                           + (bq.size + bkv.size) * b_itemsize
                           + M * (qk_pad + kv_pad) * o_itemsize),
    )

    q2, kv2 = pl.pallas_call(
        _qkv_kernel,
        out_shape=(jax.ShapeDtypeStruct((M, qk_pad), out_dtype),
                   jax.ShapeDtypeStruct((M, kv_pad), out_dtype)),
        grid_spec=pltpu.PrefetchScalarGridSpec(
            num_scalar_prefetch=0,
            grid=grid,
            in_specs=[
                # streamed activation tile (varies per grid step)
                pl.BlockSpec((tm_eff, dim), lambda i: (i, 0),
                             pipeline_mode=pl.Buffered(x_buffers)),
                # grid-invariant weights/biases: DMA'd once, single-buffered
                pl.BlockSpec((dim, qk_pad), lambda i: (0, 0),
                             pipeline_mode=pl.Buffered(1)),
                pl.BlockSpec((1, qk_pad), lambda i: (0, 0),
                             pipeline_mode=pl.Buffered(1)),
                pl.BlockSpec((dim, kv_pad), lambda i: (0, 0),
                             pipeline_mode=pl.Buffered(1)),
                pl.BlockSpec((1, kv_pad), lambda i: (0, 0),
                             pipeline_mode=pl.Buffered(1)),
            ],
            out_specs=[
                pl.BlockSpec((tm_eff, qk_pad), lambda i: (i, 0)),
                pl.BlockSpec((tm_eff, kv_pad), lambda i: (i, 0)),
            ],
        ),
        compiler_params=pltpu.CompilerParams(
            dimension_semantics=("parallel",),
            vmem_limit_bytes=vmem_limit),
        cost_estimate=cost,
    )(x2, wq, bq, wkv, bkv)

    if qk_pad != qk_dim:
        q2 = q2[:, :qk_dim]
    if kv_pad != kv_dim:
        kv2 = kv2[:, :kv_dim]
    return q2.reshape(B, N, qk_dim), kv2.reshape(B, N, kv_dim)


def qkv_linear_reference(x, weight, bias, qk_dim):
    """Pure-JAX reference mirroring the PyTorch forward."""
    y = jnp.einsum("bnd,de->bne",
                   x.astype(jnp.float32), weight.astype(jnp.float32))
    y = y + bias.astype(jnp.float32)
    return y[..., :qk_dim], y[..., qk_dim:]


if __name__ == "__main__":
    # Lane-dense config: qk width = 128, kv width = qk_dim + dim = 256.
    B, N, dim, qk_dim = 2, 256, 128, 128
    key = jax.random.PRNGKey(0)
    kx, kw, kb, kx2 = jax.random.split(key, 4)
    x = jax.random.normal(kx, (B, N, dim), jnp.float32)
    weight = jax.random.normal(kw, (dim, 2 * qk_dim + dim), jnp.float32) * 0.1
    bias = jax.random.normal(kb, (2 * qk_dim + dim,), jnp.float32) * 0.1

    q_ref, kv_ref = qkv_linear_reference(x, weight, bias, qk_dim)
    scale = max(1.0, float(jnp.max(jnp.abs(kv_ref))))

    # f32 storage path; tm=256 so the M grid has 2 parallel steps.
    q, kv = qkv_linear_pallas(x, weight, bias, qk_dim, tm=256)
    (q, kv) = jax.block_until_ready((q, kv))
    assert q.shape == (B, N, qk_dim) and kv.shape == (B, N, qk_dim + dim)
    err = max(float(jnp.max(jnp.abs(q - q_ref))),
              float(jnp.max(jnp.abs(kv - kv_ref))))
    assert err < 2e-2 * scale, f"f32 path mismatch vs reference: {err}"

    # bf16 MXU path: weights cast once at "model init"; x stays f32 in HBM and
    # is cast to bf16 inside the kernel (no wrapper-side HBM pass over x).
    w_bf16 = weight.astype(jnp.bfloat16)
    q16, kv16 = qkv_linear_pallas(x, w_bf16, bias, qk_dim, tm=256)
    (q16, kv16) = jax.block_until_ready((q16, kv16))
    err16 = max(float(jnp.max(jnp.abs(q16 - q_ref))),
                float(jnp.max(jnp.abs(kv16 - kv_ref))))
    assert err16 < 1e-1 * scale, f"bf16 path mismatch vs reference: {err16}"

    # Ragged / non-lane-dense config: qk_dim=96 (padded to 128 internally),
    # M=100 (ragged last row-block handled by Pallas boundary masking).
    B3, N3, qk3 = 2, 50, 96
    w3 = jax.random.normal(kw, (dim, 2 * qk3 + dim), jnp.float32) * 0.1
    b3 = jax.random.normal(kb, (2 * qk3 + dim,), jnp.float32) * 0.1
    x3 = jax.random.normal(kx2, (B3, N3, dim), jnp.float32)
    q3_ref, kv3_ref = qkv_linear_reference(x3, w3, b3, qk3)
    q3, kv3 = qkv_linear_pallas(x3, w3, b3, qk3)
    (q3, kv3) = jax.block_until_ready((q3, kv3))
    assert q3.shape == (B3, N3, qk3) and kv3.shape == (B3, N3, qk3 + dim)
    err3 = max(float(jnp.max(jnp.abs(q3 - q3_ref))),
               float(jnp.max(jnp.abs(kv3 - kv3_ref))))
    assert err3 < 2e-2 * scale, f"ragged path mismatch vs reference: {err3}"

    print("KERNEL_OK")
</pallas_src>

<mosaic_0001>
module attributes {stable_mosaic.version = 11 : i64} {
  func.func @_qkv_kernel(%arg0: i32, %arg1: memref<256x128xf32, #tpu.memory_space<vmem>>, %arg2: memref<128x128xf32, #tpu.memory_space<vmem>>, %arg3: memref<1x128xf32, #tpu.memory_space<vmem>>, %arg4: memref<128x256xf32, #tpu.memory_space<vmem>>, %arg5: memref<1x256xf32, #tpu.memory_space<vmem>>, %arg6: memref<256x128xf32, #tpu.memory_space<vmem>>, %arg7: memref<256x256xf32, #tpu.memory_space<vmem>>) attributes {dimension_semantics = [#tpu.dimension_semantics<parallel>], iteration_bounds = array<i64: 2>, scalar_prefetch = 0 : i64, scratch_operands = 0 : i64, tpu.core_type = #tpu.core_type<tc>, window_params = [{pipeline_mode = #tpu.pipeline_mode<double_buffered>, transform_indices = @transform_0, window_bounds = array<i64: 256, 128>}, {pipeline_mode = #tpu.pipeline_mode<synchronous>, transform_indices = @transform_1, window_bounds = array<i64: 128, 128>}, {pipeline_mode = #tpu.pipeline_mode<synchronous>, transform_indices = @transform_2, window_bounds = array<i64: 1, 128>}, {pipeline_mode = #tpu.pipeline_mode<synchronous>, transform_indices = @transform_3, window_bounds = array<i64: 128, 256>}, {pipeline_mode = #tpu.pipeline_mode<synchronous>, transform_indices = @transform_4, window_bounds = array<i64: 1, 256>}, {transform_indices = @transform_5, window_bounds = array<i64: 256, 128>}, {transform_indices = @transform_6, window_bounds = array<i64: 256, 256>}]} {
    %c0 = arith.constant 0 : index
    %c0_0 = arith.constant 0 : index
    %0 = vector.load %arg1[%c0, %c0_0] : memref<256x128xf32, #tpu.memory_space<vmem>>, vector<256x128xf32>
    %c0_1 = arith.constant 0 : index
    %c0_2 = arith.constant 0 : index
    %1 = vector.load %arg2[%c0_1, %c0_2] : memref<128x128xf32, #tpu.memory_space<vmem>>, vector<128x128xf32>
    %cst = arith.constant dense<0.000000e+00> : vector<256x128xf32>
    %2 = tpu.matmul %0, %1, %cst {dimension_numbers = #tpu.dot_dimension_numbers<[1], [0], [0], [1], [0, 0, 1, 1], [], []>} : vector<256x128xf32>, vector<128x128xf32>, vector<256x128xf32> -> vector<256x128xf32>
    %c0_3 = arith.constant 0 : index
    %c0_4 = arith.constant 0 : index
    %3 = vector.load %arg3[%c0_3, %c0_4] : memref<1x128xf32, #tpu.memory_space<vmem>>, vector<1x128xf32>
    %4 = vector.broadcast %3 : vector<1x128xf32> to vector<256x128xf32>
    %5 = arith.addf %2, %4 : vector<256x128xf32>
    %c0_5 = arith.constant 0 : index
    %c0_6 = arith.constant 0 : index
    %6 = vector.load %arg6[%c0_5, %c0_6] : memref<256x128xf32, #tpu.memory_space<vmem>>, vector<256x128xf32>
    tpu.vector_store %arg6[%c0_5, %c0_6], %5 {strides = array<i32>} : memref<256x128xf32, #tpu.memory_space<vmem>>, vector<256x128xf32>,
    %c0_7 = arith.constant 0 : index
    %c0_8 = arith.constant 0 : index
    %7 = vector.load %arg4[%c0_7, %c0_8] : memref<128x256xf32, #tpu.memory_space<vmem>>, vector<128x256xf32>
    %cst_9 = arith.constant dense<0.000000e+00> : vector<256x256xf32>
    %8 = tpu.matmul %0, %7, %cst_9 {dimension_numbers = #tpu.dot_dimension_numbers<[1], [0], [0], [1], [0, 0, 1, 1], [], []>} : vector<256x128xf32>, vector<128x256xf32>, vector<256x256xf32> -> vector<256x256xf32>
    %c0_10 = arith.constant 0 : index
    %c0_11 = arith.constant 0 : index
    %9 = vector.load %arg5[%c0_10, %c0_11] : memref<1x256xf32, #tpu.memory_space<vmem>>, vector<1x256xf32>
    %10 = vector.broadcast %9 : vector<1x256xf32> to vector<256x256xf32>
    %11 = arith.addf %8, %10 : vector<256x256xf32>
    %c0_12 = arith.constant 0 : index
    %c0_13 = arith.constant 0 : index
    %12 = vector.load %arg7[%c0_12, %c0_13] : memref<256x256xf32, #tpu.memory_space<vmem>>, vector<256x256xf32>
    tpu.vector_store %arg7[%c0_12, %c0_13], %11 {strides = array<i32>} : memref<256x256xf32, #tpu.memory_space<vmem>>, vector<256x256xf32>,
    return
  }
  func.func @transform_0(%arg0: i32) -> (i32, i32) {
    %c0_i32 = arith.constant 0 : i32
    %c0_i32_0 = arith.constant 0 : i32
    return %arg0, %c0_i32 : i32, i32
  }
  func.func @transform_1(%arg0: i32) -> (i32, i32) {
    %c0_i32 = arith.constant 0 : i32
    %c0_i32_0 = arith.constant 0 : i32
    %c0_i32_1 = arith.constant 0 : i32
    return %c0_i32, %c0_i32_0 : i32, i32
  }
  func.func @transform_2(%arg0: i32) -> (i32, i32) {
    %c0_i32 = arith.constant 0 : i32
    %c0_i32_0 = arith.constant 0 : i32
    %c0_i32_1 = arith.constant 0 : i32
    return %c0_i32, %c0_i32_0 : i32, i32
  }
  func.func @transform_3(%arg0: i32) -> (i32, i32) {
    %c0_i32 = arith.constant 0 : i32
    %c0_i32_0 = arith.constant 0 : i32
    %c0_i32_1 = arith.constant 0 : i32
    return %c0_i32, %c0_i32_0 : i32, i32
  }
  func.func @transform_4(%arg0: i32) -> (i32, i32) {
    %c0_i32 = arith.constant 0 : i32
    %c0_i32_0 = arith.constant 0 : i32
    %c0_i32_1 = arith.constant 0 : i32
    return %c0_i32, %c0_i32_0 : i32, i32
  }
  func.func @transform_5(%arg0: i32) -> (i32, i32) {
    %c0_i32 = arith.constant 0 : i32
    %c0_i32_0 = arith.constant 0 : i32
    return %arg0, %c0_i32 : i32, i32
  }
  func.func @transform_6(%arg0: i32) -> (i32, i32) {
    %c0_i32 = arith.constant 0 : i32
    %c0_i32_0 = arith.constant 0 : i32
    return %arg0, %c0_i32 : i32, i32
  }
}

</mosaic_0001>

<llo_original>
// kernel: tpu_custom_call.1
$region0: #{tpu_custom_call.1}
  #allocation0 [shape = 'u32[]', space=smem, size = 0x4, offset = 0x4, fixed_abs, tag = 'smem constant byte address 0x4 - core index']
  #allocation1 [shape = 'u32[144,128]{1,0:T(1,128)}', space=vmem, size = 0x12000, scoped, tag = 'internal scratch']
  %s0 = inlined_call_operand.hbm [shape: f32[512,128], index: 0, kind: input, shape index: {}]
  %s1 = inlined_call_operand.hbm [shape: f32[128,128], index: 1, kind: input, shape index: {}]
  %s2 = inlined_call_operand.vmem [shape: f32[1,128], index: 2, kind: input, shape index: {}]
  %s3 = inlined_call_operand.hbm [shape: f32[128,256], index: 3, kind: input, shape index: {}]
  %s4 = inlined_call_operand.vmem [shape: f32[1,256], index: 4, kind: input, shape index: {}]
  %s5 = inlined_call_operand.hbm [shape: f32[512,128], index: 5, kind: output, shape index: {0}]
  %s6 = inlined_call_operand.hbm [shape: f32[512,256], index: 6, kind: output, shape index: {1}]
  %7 = xla_tuple %s5, %s6
  %s8 = sld [smem:[#allocation0]]
  $region73: #{tpu_custom_call.1} parent=0
    _
  %s10 = ssub.s32 1, %s8
  %s11 = scalar_select 0, %s10, %s8
  $region1: #{tpu_custom_call.1} parent=0
    #allocation2 [shape = 'u8[262144]{0}', space=vmem, size = 0x40000, scoped, tag = 'input window, operand 0']
    #allocation3 [shape = 's32[2]{0}', space=sflag, size = 0x8, scoped, tag = 'scoped memory for tpu_custom_call.1']
    #allocation4 [shape = 's32[2]{0}', space=sflag, size = 0x8, scoped, tag = 'scoped memory for tpu_custom_call.1']
    #allocation5 [shape = 'u8[65536]{0}', space=vmem, size = 0x10000, scoped, tag = 'input window, operand 1, single buffered']
    #allocation6 [shape = 's32[1]{0}', space=sflag, size = 0x4, scoped, tag = 'scoped memory for tpu_custom_call.1']
    #allocation7 [shape = 'u8[131072]{0}', space=vmem, size = 0x20000, scoped, tag = 'input window, operand 3, single buffered']
    #allocation8 [shape = 'u8[262144]{0}', space=vmem, size = 0x40000, scoped, tag = 'output window, operand 0']
    #allocation9 [shape = 'u8[524288]{0}', space=vmem, size = 0x80000, scoped, tag = 'output window, operand 1']
    #allocation10 [shape = 's32[2]{0}', space=sflag, size = 0x8, scoped, tag = 'scoped memory for tpu_custom_call.1']
    %12 = vsyncpa [#allocation3], 0
    %s13 = scalar_lea.sflag [#allocation3], 1
    %14 = vsyncpa %s13, 0
    %15 = vsyncpa [#allocation6], 0
    %16 = vsyncpa [#allocation4], 0
    %s17 = scalar_lea.sflag [#allocation4], 1
    %18 = vsyncpa %s17, 0
    %19 = vsyncpa [#allocation10], 0
    %s20 = scalar_lea.sflag [#allocation10], 1
    %21 = vsyncpa %s20, 0
    loop: start=0, step=1, limit=4
    $region2: #{tpu_custom_call.1} parent=1 // loop_pre_header
      _
    $region3: #{tpu_custom_call.1} parent=1 // loop_header
      %s23 = sphi 0, %s27
      %p24 = scmp.ge.s32.totalorder %s23, 4
      %s33 = sphi 0, %s35
      %s36 = sphi 0, %s33
      %s37 = sphi 0, %s36
      %s53 = sphi 0, %s37
      %s57 = sphi 0, %s57
      %s59 = sphi 0, %s57
      %s60 = sphi 0, %s59
      %s74 = sphi 0, %s60
      %s78 = sphi 0, %s78
      %s80 = sphi 0, %s78
      %s81 = sphi 0, %s80
      %s95 = sphi 0, %s81
      %s99 = sphi 0, %s99
      %s101 = sphi 0, %s99
      %s102 = sphi 0, %s101
      %s116 = sphi 0, %s102
      %s120 = sphi 0, %s120
      %s122 = sphi 0, %s120
      %s123 = sphi 0, %s122
      %s137 = sphi 0, %s123
      %s143 = sphi 0, %s145
      %s146 = sphi 0, %s143
      %s147 = sphi 0, %s146
      %s163 = sphi 0, %s147
      %s169 = sphi 0, %s171
      %s172 = sphi 0, %s169
      %s173 = sphi 0, %s172
      %s189 = sphi 0, %s173
    $region4: #{tpu_custom_call.1} parent=1 // loop_header_branch
      %26 = sbr.rel (%p24) target = $region8
    $region5: #{tpu_custom_call.1} parent=1 // loop_body
      %s28 = ssub.s32 %s23, 1
      %s29 = ssub.s32 %s23, 2
      %s30 = sadd.s32 %s23, 1
      %s31 = ssub.s32 %s23, %s30
      %p32 = scmp.eq.s32.totalorder %s31, 0
      %s34 = sadd.s32 %s33, 1
      %s35 = scalar_select %p32, %s33, %s34
      %p38 = pneg %p32
      %p39 = scmp.eq.s32.totalorder %s23, 1
      %p40 = por %p38, %p39
      %p41 = scmp.ne.s32.totalorder %s33, %s36
      %p42 = scmp.eq.s32.totalorder %s23, 0
      %p43 = por %p41, %p42
      %p44 = scmp.ne.s32.totalorder %s33, %s36
      %p45 = scmp.eq.s32.totalorder %s28, 1
      %p46 = por %p44, %p45
      %p47 = scmp.ne.s32.totalorder %s36, %s37
      %p48 = scmp.eq.s32.totalorder %s28, 0
      %p49 = por %p47, %p48
      %p50 = scmp.ne.s32.totalorder %s36, %s37
      %p51 = scmp.eq.s32.totalorder %s29, 1
      %p52 = por %p50, %p51
      %p54 = scmp.ne.s32.totalorder %s37, %s53
      %p55 = scmp.eq.s32.totalorder %s29, 0
      %p56 = por %p54, %p55
      %s58 = sadd.s32 %s57, 1
      %p61 = scmp.eq.s32.totalorder %s23, 1
      %p62 = scmp.ne.s32.totalorder %s57, %s59
      %p63 = scmp.eq.s32.totalorder %s23, 0
      %p64 = por %p62, %p63
      %p65 = scmp.ne.s32.totalorder %s57, %s59
      %p66 = scmp.eq.s32.totalorder %s28, 1
      %p67 = por %p65, %p66
      %p68 = scmp.ne.s32.totalorder %s59, %s60
      %p69 = scmp.eq.s32.totalorder %s28, 0
      %p70 = por %p68, %p69
      %p71 = scmp.ne.s32.totalorder %s59, %s60
      %p72 = scmp.eq.s32.totalorder %s29, 1
      %p73 = por %p71, %p72
      %p75 = scmp.ne.s32.totalorder %s60, %s74
      %p76 = scmp.eq.s32.totalorder %s29, 0
      %p77 = por %p75, %p76
      %s79 = sadd.s32 %s78, 1
      %p82 = scmp.eq.s32.totalorder %s23, 1
      %p83 = scmp.ne.s32.totalorder %s78, %s80
      %p84 = scmp.eq.s32.totalorder %s23, 0
      %p85 = por %p83, %p84
      %p86 = scmp.ne.s32.totalorder %s78, %s80
      %p87 = scmp.eq.s32.totalorder %s28, 1
      %p88 = por %p86, %p87
      %p89 = scmp.ne.s32.totalorder %s80, %s81
      %p90 = scmp.eq.s32.totalorder %s28, 0
      %p91 = por %p89, %p90
      %p92 = scmp.ne.s32.totalorder %s80, %s81
      %p93 = scmp.eq.s32.totalorder %s29, 1
      %p94 = por %p92, %p93
      %p96 = scmp.ne.s32.totalorder %s81, %s95
      %p97 = scmp.eq.s32.totalorder %s29, 0
      %p98 = por %p96, %p97
      %s100 = sadd.s32 %s99, 1
      %p103 = scmp.eq.s32.totalorder %s23, 1
      %p104 = scmp.ne.s32.totalorder %s99, %s101
      %p105 = scmp.eq.s32.totalorder %s23, 0
      %p106 = por %p104, %p105
      %p107 = scmp.ne.s32.totalorder %s99, %s101
      %p108 = scmp.eq.s32.totalorder %s28, 1
      %p109 = por %p107, %p108
      %p110 = scmp.ne.s32.totalorder %s101, %s102
      %p111 = scmp.eq.s32.totalorder %s28, 0
      %p112 = por %p110, %p111
      %p113 = scmp.ne.s32.totalorder %s101, %s102
      %p114 = scmp.eq.s32.totalorder %s29, 1
      %p115 = por %p113, %p114
      %p117 = scmp.ne.s32.totalorder %s102, %s116
      %p118 = scmp.eq.s32.totalorder %s29, 0
      %p119 = por %p117, %p118
      %s121 = sadd.s32 %s120, 1
      %p124 = scmp.eq.s32.totalorder %s23, 1
      %p125 = scmp.ne.s32.totalorder %s120, %s122
      %p126 = scmp.eq.s32.totalorder %s23, 0
      %p127 = por %p125, %p126
      %p128 = scmp.ne.s32.totalorder %s120, %s122
      %p129 = scmp.eq.s32.totalorder %s28, 1
      %p130 = por %p128, %p129
      %p131 = scmp.ne.s32.totalorder %s122, %s123
      %p132 = scmp.eq.s32.totalorder %s28, 0
      %p133 = por %p131, %p132
      %p134 = scmp.ne.s32.totalorder %s122, %s123
      %p135 = scmp.eq.s32.totalorder %s29, 1
      %p136 = por %p134, %p135
      %p138 = scmp.ne.s32.totalorder %s123, %s137
      %p139 = scmp.eq.s32.totalorder %s29, 0
      %p140 = por %p138, %p139
      %s141 = ssub.s32 %s23, %s30
      %p142 = scmp.eq.s32.totalorder %s141, 0
      %s144 = sadd.s32 %s143, 1
      %s145 = scalar_select %p142, %s143, %s144
      %p148 = pneg %p142
      %p149 = scmp.eq.s32.totalorder %s23, 1
      %p150 = por %p148, %p149
      %p151 = scmp.ne.s32.totalorder %s143, %s146
      %p152 = scmp.eq.s32.totalorder %s23, 0
      %p153 = por %p151, %p152
      %p154 = scmp.ne.s32.totalorder %s143, %s146
      %p155 = scmp.eq.s32.totalorder %s28, 1
      %p156 = por %p154, %p155
      %p157 = scmp.ne.s32.totalorder %s146, %s147
      %p158 = scmp.eq.s32.totalorder %s28, 0
      %p159 = por %p157, %p158
      %p160 = scmp.ne.s32.totalorder %s146, %s147
      %p161 = scmp.eq.s32.totalorder %s29, 1
      %p162 = por %p160, %p161
      %p164 = scmp.ne.s32.totalorder %s147, %s163
      %p165 = scmp.eq.s32.totalorder %s29, 0
      %p166 = por %p164, %p165
      %s167 = ssub.s32 %s23, %s30
      %p168 = scmp.eq.s32.totalorder %s167, 0
      %s170 = sadd.s32 %s169, 1
      %s171 = scalar_select %p168, %s169, %s170
      %p174 = pneg %p168
      %p175 = scmp.eq.s32.totalorder %s23, 1
      %p176 = por %p174, %p175
      %p177 = scmp.ne.s32.totalorder %s169, %s172
      %p178 = scmp.eq.s32.totalorder %s23, 0
      %p179 = por %p177, %p178
      %p180 = scmp.ne.s32.totalorder %s169, %s172
      %p181 = scmp.eq.s32.totalorder %s28, 1
      %p182 = por %p180, %p181
      %p183 = scmp.ne.s32.totalorder %s172, %s173
      %p184 = scmp.eq.s32.totalorder %s28, 0
      %p185 = por %p183, %p184
      %p186 = scmp.ne.s32.totalorder %s172, %s173
      %p187 = scmp.eq.s32.totalorder %s29, 1
      %p188 = por %p186, %p187
      %p190 = scmp.ne.s32.totalorder %s173, %s189
      %p191 = scmp.eq.s32.totalorder %s29, 0
      %p192 = por %p190, %p191
      %p193 = scmp.le.s32.totalorder 1, %s23
      %p194 = scmp.lt.s32.totalorder %s23, 3
      %p195 = pnand %p193, %p194
      %p196 = pneg %p195
      // Predicated region
      $region9: #{tpu_custom_call.1} parent=5 // pred_check
        _
      $region10: #{tpu_custom_call.1} parent=5 // pred_check_branch
        %198 = sbr.rel (%p195) target = $region12
      $region11: #{tpu_custom_call.1} parent=5 // pred_region
        %s199 = ssub.s32 %s23, 1
        // Predicated region
        $region13: #{tpu_custom_call.1} parent=11 // pred_check
          %p200 = pneg %p70
        $region14: #{tpu_custom_call.1} parent=11 // pred_check_branch
          %202 = sbr.rel (%p200) target = $region16
        $region15: #{tpu_custom_call.1} parent=11 // pred_region
          %s204 = ssub.s32 2048, 2048
          %205 = vsyncadd [#allocation6], %s204
          %s206 = sshll.u32 [#allocation5], 4
          %s207 = int_to_ptr.vmem [resolvable:$true] %s206
          %212 = dma.hbm_to_vmem [thread:$0]  %s1, 2048, %s207, [#allocation6], 128, 128, 8
        $region16: #{tpu_custom_call.1} parent=11 // pred_fallthru
          _
        // Predicated region
        $region17: #{tpu_custom_call.1} parent=11 // pred_check
          %p213 = pneg %p91
        $region18: #{tpu_custom_call.1} parent=11 // pred_check_branch
          %215 = sbr.rel (%p213) target = $region20
        $region19: #{tpu_custom_call.1} parent=11 // pred_region
          _
        $region20: #{tpu_custom_call.1} parent=11 // pred_fallthru
          _
        // Predicated region
        $region21: #{tpu_custom_call.1} parent=11 // pred_check
          %p216 = pneg %p112
        $region22: #{tpu_custom_call.1} parent=11 // pred_check_branch
          %218 = sbr.rel (%p216) target = $region24
        $region23: #{tpu_custom_call.1} parent=11 // pred_region
          %s220 = ssub.s32 4096, 4096
          %221 = vsyncadd [#allocation6], %s220
          %s222 = sshll.u32 [#allocation7], 4
          %s223 = int_to_ptr.vmem [resolvable:$true] %s222
          %228 = dma.hbm_to_vmem [thread:$0]  %s3, 4096, %s223, [#allocation6], 256, 256, 16
        $region24: #{tpu_custom_call.1} parent=11 // pred_fallthru
          _
        // Predicated region
        $region25: #{tpu_custom_call.1} parent=11 // pred_check
          %p229 = pneg %p133
        $region26: #{tpu_custom_call.1} parent=11 // pred_check_branch
          %231 = sbr.rel (%p229) target = $region28
        $region27: #{tpu_custom_call.1} parent=11 // pred_region
          _
        $region28: #{tpu_custom_call.1} parent=11 // pred_fallthru
          _
      $region12: #{tpu_custom_call.1} parent=5 // pred_fallthru
        _
      %p232 = scmp.lt.s32.totalorder %s23, 2
      // Predicated region
      $region29: #{tpu_custom_call.1} parent=5 // pred_check
        %p233 = pneg %p232
      $region30: #{tpu_custom_call.1} parent=5 // pred_check_branch
        %235 = sbr.rel (%p233) target = $region32
      $region31: #{tpu_custom_call.1} parent=5 // pred_region
        // Predicated region
        $region33: #{tpu_custom_call.1} parent=31 // pred_check
          %p236 = pneg %p43
        $region34: #{tpu_custom_call.1} parent=31 // pred_check_branch
          %238 = sbr.rel (%p236) target = $region36
        $region35: #{tpu_custom_call.1} parent=31 // pred_region
          %s239 = sand.u32 %s33, 1
          %s240 = scalar_lea.sflag [#allocation3], %s239
          %s241 = sand.u32 %s33, 1
          %s242 = smul.addr %s241, 256
          %s243 = scalar_lea.vmem [#allocation2], %s242
          %s244 = smul.u32 32, %s23
          %s246 = ssub.s32 4096, 4096
          %247 = vsyncadd %s240, %s246
          %s248 = smul.addr %s244, 128
          %s249 = scalar_lea.hbm %s0, %s248
          %s250 = sshll.u32 %s243, 4
          %s251 = int_to_ptr.vmem [resolvable:$true] %s250
          %256 = dma.hbm_to_vmem [thread:$0]  %s249, 4096, %s251, %s240, 128, 128, 8
        $region36: #{tpu_custom_call.1} parent=31 // pred_fallthru
          _
      $region32: #{tpu_custom_call.1} parent=5 // pred_fallthru
        _
      %p257 = scmp.le.s32.totalorder 1, %s23
      %p258 = scmp.lt.s32.totalorder %s23, 3
      %p259 = pnand %p257, %p258
      %p260 = pneg %p259
      // Predicated region
      $region37: #{tpu_custom_call.1} parent=5 // pred_check
        _
      $region38: #{tpu_custom_call.1} parent=5 // pred_check_branch
        %262 = sbr.rel (%p259) target = $region40
      $region39: #{tpu_custom_call.1} parent=5 // pred_region
        %s263 = ssub.s32 %s23, 1
        %s264 = sand.u32 %s36, 1
        %s265 = scalar_lea.sflag [#allocation3], %s264
        %s266 = sand.u32 %s36, 1
        %s267 = smul.addr %s266, 256
        %s268 = scalar_lea.vmem [#allocation2], %s267
        // Predicated region
        $region41: #{tpu_custom_call.1} parent=39 // pred_check
          %p269 = pneg %p49
        $region42: #{tpu_custom_call.1} parent=39 // pred_check_branch
          %271 = sbr.rel (%p269) target = $region44
        $region43: #{tpu_custom_call.1} parent=39 // pred_region
          %272 = dma.done %s265, 4096
        $region44: #{tpu_custom_call.1} parent=39 // pred_fallthru
          _
        // Predicated region
        $region45: #{tpu_custom_call.1} parent=39 // pred_check
          %p273 = pneg %p70
        $region46: #{tpu_custom_call.1} parent=39 // pred_check_branch
          %275 = sbr.rel (%p273) target = $region48
        $region47: #{tpu_custom_call.1} parent=39 // pred_region
          %276 = dma.done [#allocation6], 2048
        $region48: #{tpu_custom_call.1} parent=39 // pred_fallthru
          _
        // Predicated region
        $region49: #{tpu_custom_call.1} parent=39 // pred_check
          %p277 = pneg %p112
        $region50: #{tpu_custom_call.1} parent=39 // pred_check_branch
          %279 = sbr.rel (%p277) target = $region52
        $region51: #{tpu_custom_call.1} parent=39 // pred_region
          %280 = dma.done [#allocation6], 4096
        $region52: #{tpu_custom_call.1} parent=39 // pred_fallthru
          _
        %s281 = sand.u32 %s36, 1
        %s282 = scalar_lea.sflag [#allocation3], %s281
        %s283 = sand.u32 %s36, 1
        %s284 = smul.addr %s283, 256
        %s285 = scalar_lea.vmem [#allocation2], %s284
        %p286 = pneg %p49
        %p287 = pneg %p46
        %p288 = pneg %p70
        %p289 = pneg %p67
        %p290 = pneg %p91
        %p291 = pneg %p88
        %p292 = pneg %p112
        %p293 = pneg %p109
        %p294 = pneg %p133
        %p295 = pneg %p130
        %p296 = pneg %p159
        %p297 = pneg %p156
        %s298 = sand.u32 %s146, 1
        %s299 = scalar_lea.sflag [#allocation4], %s298
        %s300 = sand.u32 %s146, 1
        %s301 = smul.addr %s300, 256
        %s302 = scalar_lea.vmem [#allocation8], %s301
        %p303 = pneg %p185
        %p304 = pneg %p182
        %s305 = sand.u32 %s172, 1
        %s306 = scalar_lea.sflag [#allocation10], %s305
        %s307 = sand.u32 %s172, 1
        %s308 = smul.addr %s307, 512
        %s309 = scalar_lea.vmem [#allocation9], %s308
        %s310 = smul.u32 32, %s28
        %s311 = smul.u32 32, %s28
        %s312 = smul.u32 32, %s28
        %v313 = vld [vmem:[%s268] sm:$0xff]
        %v314 = vld [vmem:[%s268 + $0x8] sm:$0xff]
        %v315 = vld [vmem:[%s268 + $0x10] sm:$0xff]
        %v316 = vld [vmem:[%s268 + $0x18] sm:$0xff]
        %v317 = vld [vmem:[%s268 + $0x20] sm:$0xff]
        %v318 = vld [vmem:[%s268 + $0x28] sm:$0xff]
        %v319 = vld [vmem:[%s268 + $0x30] sm:$0xff]
        %v320 = vld [vmem:[%s268 + $0x38] sm:$0xff]
        %v321 = vld [vmem:[%s268 + $0x40] sm:$0xff]
        %v322 = vld [vmem:[%s268 + $0x48] sm:$0xff]
        %v323 = vld [vmem:[%s268 + $0x50] sm:$0xff]
        %v324 = vld [vmem:[%s268 + $0x58] sm:$0xff]
        %v325 = vld [vmem:[%s268 + $0x60] sm:$0xff]
        %v326 = vld [vmem:[%s268 + $0x68] sm:$0xff]
        %v327 = vld [vmem:[%s268 + $0x70] sm:$0xff]
        %v328 = vld [vmem:[%s268 + $0x78] sm:$0xff]
        %v329 = vld [vmem:[%s268 + $0x80] sm:$0xff]
        %v330 = vld [vmem:[%s268 + $0x88] sm:$0xff]
        %v331 = vld [vmem:[%s268 + $0x90] sm:$0xff]
        %v332 = vld [vmem:[%s268 + $0x98] sm:$0xff]
        %v333 = vld [vmem:[%s268 + $0xa0] sm:$0xff]
        %v334 = vld [vmem:[%s268 + $0xa8] sm:$0xff]
        %v335 = vld [vmem:[%s268 + $0xb0] sm:$0xff]
        %v336 = vld [vmem:[%s268 + $0xb8] sm:$0xff]
        %v337 = vld [vmem:[%s268 + $0xc0] sm:$0xff]
        %v338 = vld [vmem:[%s268 + $0xc8] sm:$0xff]
        %v339 = vld [vmem:[%s268 + $0xd0] sm:$0xff]
        %v340 = vld [vmem:[%s268 + $0xd8] sm:$0xff]
        %v341 = vld [vmem:[%s268 + $0xe0] sm:$0xff]
        %v342 = vld [vmem:[%s268 + $0xe8] sm:$0xff]
        %v343 = vld [vmem:[%s268 + $0xf0] sm:$0xff]
        %v344 = vld [vmem:[%s268 + $0xf8] sm:$0xff]
        %v345 = vld [vmem:[#allocation5] sm:$0xff]
        %v346 = vld [vmem:[#allocation5 + $0x8] sm:$0xff]
        %v347 = vld [vmem:[#allocation5 + $0x10] sm:$0xff]
        %v348 = vld [vmem:[#allocation5 + $0x18] sm:$0xff]
        %v349 = vld [vmem:[#allocation5 + $0x20] sm:$0xff]
        %v350 = vld [vmem:[#allocation5 + $0x28] sm:$0xff]
        %v351 = vld [vmem:[#allocation5 + $0x30] sm:$0xff]
        %v352 = vld [vmem:[#allocation5 + $0x38] sm:$0xff]
        %v353 = vld [vmem:[#allocation5 + $0x40] sm:$0xff]
        %v354 = vld [vmem:[#allocation5 + $0x48] sm:$0xff]
        %v355 = vld [vmem:[#allocation5 + $0x50] sm:$0xff]
        %v356 = vld [vmem:[#allocation5 + $0x58] sm:$0xff]
        %v357 = vld [vmem:[#allocation5 + $0x60] sm:$0xff]
        %v358 = vld [vmem:[#allocation5 + $0x68] sm:$0xff]
        %v359 = vld [vmem:[#allocation5 + $0x70] sm:$0xff]
        %v360 = vld [vmem:[#allocation5 + $0x78] sm:$0xff]
        %v361 = vld [vmem:[%s2] sm:$0x1]
        %v363 = vlaneseq
        %v364 = vshrl.u32 %v363, 7
        %v365 = vsub.s32 0, %v364
        %v366 = vrot.slane %v361, %v365
        %368 = vmatprep.subr.mxu0 0.0
        %369 = vmatpush1.msra.mxu0 %v345
        %370 = vmatprep.subr.mxu0 0.0
        %371 = vmatpush1.msra.mxu0 %v346
        %372 = vmatprep.subr.mxu0 0.0
        %373 = vmatpush1.msra.mxu0 %v347
        %374 = vmatprep.subr.mxu0 0.0
        %375 = vmatpush1.msra.mxu0 %v348
        %376 = vmatprep.subr.mxu0 0.0
        %377 = vmatpush1.msra.mxu0 %v349
        %378 = vmatprep.subr.mxu0 0.0
        %379 = vmatpush1.msra.mxu0 %v350
        %380 = vmatprep.subr.mxu0 0.0
        %381 = vmatpush1.msra.mxu0 %v351
        %382 = vmatprep.subr.mxu0 0.0
        %383 = vmatpush1.msra.mxu0 %v352
        %384 = vmatprep.subr.mxu0 0.0
        %385 = vmatpush1.msra.mxu0 %v353
        %386 = vmatprep.subr.mxu0 0.0
        %387 = vmatpush1.msra.mxu0 %v354
        %388 = vmatprep.subr.mxu0 0.0
        %389 = vmatpush1.msra.mxu0 %v355
        %390 = vmatprep.subr.mxu0 0.0
        %391 = vmatpush1.msra.mxu0 %v356
        %392 = vmatprep.subr.mxu0 0.0
        %393 = vmatpush1.msra.mxu0 %v357
        %394 = vmatprep.subr.mxu0 0.0
        %395 = vmatpush1.msra.mxu0 %v358
        %396 = vmatprep.subr.mxu0 0.0
        %397 = vmatpush1.msra.mxu0 %v359
        %398 = vmatprep.subr.mxu0 0.0
        %399 = vmatpush1.msra.mxu0 %v360
        %400 = vmatprep.subr.mxu0 0.0
        %401 = vmatpush1.msra.mxu0 0.0
        %402 = vmatprep.subr.mxu0 0.0
        %403 = vmatpush1.msra.mxu0 0.0
        %404 = vmatprep.subr.mxu0 0.0
        %405 = vmatpush1.msra.mxu0 0.0
        %406 = vmatprep.subr.mxu0 0.0
        %407 = vmatpush1.msra.mxu0 0.0
        %408 = vmatprep.subr.mxu0 0.0
        %409 = vmatpush1.msra.mxu0 0.0
        %410 = vmatprep.subr.mxu0 0.0
        %411 = vmatpush1.msra.mxu0 0.0
        %412 = vmatprep.subr.mxu0 0.0
        %413 = vmatpush1.msra.mxu0 0.0
        %414 = vmatprep.subr.mxu0 0.0
        %415 = vmatpush1.msra.mxu0 0.0
        %416 = vmatprep.subr.mxu0 0.0
        %417 = vmatpush1.msra.mxu0 0.0
        %418 = vmatprep.subr.mxu0 0.0
        %419 = vmatpush1.msra.mxu0 0.0
        %420 = vmatprep.subr.mxu0 0.0
        %421 = vmatpush1.msra.mxu0 0.0
        %422 = vmatprep.subr.mxu0 0.0
        %423 = vmatpush1.msra.mxu0 0.0
        %424 = vmatprep.subr.mxu0 0.0
        %425 = vmatpush1.msra.mxu0 0.0
        %426 = vmatprep.subr.mxu0 0.0
        %427 = vmatpush1.msra.mxu0 0.0
        %428 = vmatprep.subr.mxu0 0.0
        %429 = vmatpush1.msra.mxu0 0.0
        %430 = vmatprep.subr.mxu0 0.0
        %431 = vmatpush1.msra.mxu0 0.0
        %432 = vmatprep.mubr.f32.mxu0 0.0
        %433 = vmatmul.mubr.f32.gmra.mrb[0].mxu0 %v313
        %v434 = vpop.f32.mrb[0].mxu0
        %v435 = vadd.f32 %v366, %v434
        %v436 = vpop.f32.mrb[0].mxu0
        %437 = vmatprep.mubr.f32.mxu0 0.0
        %438 = vmatmul.mubr.f32.gmra.mrb[0].mxu0 %v314
        %v439 = vpop.f32.mrb[0].mxu0
        %v440 = vadd.f32 %v366, %v439
        %v441 = vpop.f32.mrb[0].mxu0
        %442 = vmatprep.mubr.f32.mxu0 0.0
        %443 = vmatmul.mubr.f32.gmra.mrb[0].mxu0 %v315
        %v444 = vpop.f32.mrb[0].mxu0
        %v445 = vadd.f32 %v366, %v444
        %v446 = vpop.f32.mrb[0].mxu0
        %447 = vmatprep.mubr.f32.mxu0 0.0
        %448 = vmatmul.mubr.f32.gmra.mrb[0].mxu0 %v316
        %v449 = vpop.f32.mrb[0].mxu0
        %v450 = vadd.f32 %v366, %v449
        %v451 = vpop.f32.mrb[0].mxu0
        %452 = vmatprep.mubr.f32.mxu0 0.0
        %453 = vmatmul.mubr.f32.gmra.mrb[0].mxu0 %v317
        %v454 = vpop.f32.mrb[0].mxu0
        %v455 = vadd.f32 %v366, %v454
        %v456 = vpop.f32.mrb[0].mxu0
        %457 = vmatprep.mubr.f32.mxu0 0.0
        %458 = vmatmul.mubr.f32.gmra.mrb[0].mxu0 %v318
        %v459 = vpop.f32.mrb[0].mxu0
        %v460 = vadd.f32 %v366, %v459
        %v461 = vpop.f32.mrb[0].mxu0
        %462 = vmatprep.mubr.f32.mxu0 0.0
        %463 = vmatmul.mubr.f32.gmra.mrb[0].mxu0 %v319
        %v464 = vpop.f32.mrb[0].mxu0
        %v465 = vadd.f32 %v366, %v464
        %v466 = vpop.f32.mrb[0].mxu0
        %467 = vmatprep.mubr.f32.mxu0 0.0
        %468 = vmatmul.mubr.f32.gmra.mrb[0].mxu0 %v320
        %v469 = vpop.f32.mrb[0].mxu0
        %v470 = vadd.f32 %v366, %v469
        %v471 = vpop.f32.mrb[0].mxu0
        %472 = vmatprep.mubr.f32.mxu0 0.0
        %473 = vmatmul.mubr.f32.gmra.mrb[0].mxu0 %v321
        %v474 = vpop.f32.mrb[0].mxu0
        %v475 = vadd.f32 %v366, %v474
        %v476 = vpop.f32.mrb[0].mxu0
        %477 = vmatprep.mubr.f32.mxu0 0.0
        %478 = vmatmul.mubr.f32.gmra.mrb[0].mxu0 %v322
        %v479 = vpop.f32.mrb[0].mxu0
        %v480 = vadd.f32 %v366, %v479
        %v481 = vpop.f32.mrb[0].mxu0
        %482 = vmatprep.mubr.f32.mxu0 0.0
        %483 = vmatmul.mubr.f32.gmra.mrb[0].mxu0 %v323
        %v484 = vpop.f32.mrb[0].mxu0
        %v485 = vadd.f32 %v366, %v484
        %v486 = vpop.f32.mrb[0].mxu0
        %487 = vmatprep.mubr.f32.mxu0 0.0
        %488 = vmatmul.mubr.f32.gmra.mrb[0].mxu0 %v324
        %v489 = vpop.f32.mrb[0].mxu0
        %v490 = vadd.f32 %v366, %v489
        %v491 = vpop.f32.mrb[0].mxu0
        %492 = vmatprep.mubr.f32.mxu0 0.0
        %493 = vmatmul.mubr.f32.gmra.mrb[0].mxu0 %v325
        %v494 = vpop.f32.mrb[0].mxu0
        %v495 = vadd.f32 %v366, %v494
        %v496 = vpop.f32.mrb[0].mxu0
        %497 = vmatprep.mubr.f32.mxu0 0.0
        %498 = vmatmul.mubr.f32.gmra.mrb[0].mxu0 %v326
        %v499 = vpop.f32.mrb[0].mxu0
        %v500 = vadd.f32 %v366, %v499
        %v501 = vpop.f32.mrb[0].mxu0
        %502 = vmatprep.mubr.f32.mxu0 0.0
        %503 = vmatmul.mubr.f32.gmra.mrb[0].mxu0 %v327
        %v504 = vpop.f32.mrb[0].mxu0
        %v505 = vadd.f32 %v366, %v504
        %v506 = vpop.f32.mrb[0].mxu0
        %507 = vmatprep.mubr.f32.mxu0 0.0
        %508 = vmatmul.mubr.f32.gmra.mrb[0].mxu0 %v328
        %v509 = vpop.f32.mrb[0].mxu0
        %v510 = vadd.f32 %v366, %v509
        %v511 = vpop.f32.mrb[0].mxu0
        %512 = vmatprep.mubr.f32.mxu0 0.0
        %513 = vmatmul.mubr.f32.gmra.mrb[0].mxu0 %v329
        %v514 = vpop.f32.mrb[0].mxu0
        %v515 = vadd.f32 %v366, %v514
        %v516 = vpop.f32.mrb[0].mxu0
        %517 = vmatprep.mubr.f32.mxu0 0.0
        %518 = vmatmul.mubr.f32.gmra.mrb[0].mxu0 %v330
        %v519 = vpop.f32.mrb[0].mxu0
        %v520 = vadd.f32 %v366, %v519
        %v521 = vpop.f32.mrb[0].mxu0
        %522 = vmatprep.mubr.f32.mxu0 0.0
        %523 = vmatmul.mubr.f32.gmra.mrb[0].mxu0 %v331
        %v524 = vpop.f32.mrb[0].mxu0
        %v525 = vadd.f32 %v366, %v524
        %v526 = vpop.f32.mrb[0].mxu0
        %527 = vmatprep.mubr.f32.mxu0 0.0
        %528 = vmatmul.mubr.f32.gmra.mrb[0].mxu0 %v332
        %v529 = vpop.f32.mrb[0].mxu0
        %v530 = vadd.f32 %v366, %v529
        %v531 = vpop.f32.mrb[0].mxu0
        %532 = vmatprep.mubr.f32.mxu0 0.0
        %533 = vmatmul.mubr.f32.gmra.mrb[0].mxu0 %v333
        %v534 = vpop.f32.mrb[0].mxu0
        %v535 = vadd.f32 %v366, %v534
        %v536 = vpop.f32.mrb[0].mxu0
        %537 = vmatprep.mubr.f32.mxu0 0.0
        %538 = vmatmul.mubr.f32.gmra.mrb[0].mxu0 %v334
        %v539 = vpop.f32.mrb[0].mxu0
        %v540 = vadd.f32 %v366, %v539
        %v541 = vpop.f32.mrb[0].mxu0
        %542 = vmatprep.mubr.f32.mxu0 0.0
        %543 = vmatmul.mubr.f32.gmra.mrb[0].mxu0 %v335
        %v544 = vpop.f32.mrb[0].mxu0
        %v545 = vadd.f32 %v366, %v544
        %v546 = vpop.f32.mrb[0].mxu0
        %547 = vmatprep.mubr.f32.mxu0 0.0
        %548 = vmatmul.mubr.f32.gmra.mrb[0].mxu0 %v336
        %v549 = vpop.f32.mrb[0].mxu0
        %v550 = vadd.f32 %v366, %v549
        %v551 = vpop.f32.mrb[0].mxu0
        %552 = vmatprep.mubr.f32.mxu0 0.0
        %553 = vmatmul.mubr.f32.gmra.mrb[0].mxu0 %v337
        %v554 = vpop.f32.mrb[0].mxu0
        %v555 = vadd.f32 %v366, %v554
        %v556 = vpop.f32.mrb[0].mxu0
        %557 = vmatprep.mubr.f32.mxu0 0.0
        %558 = vmatmul.mubr.f32.gmra.mrb[0].mxu0 %v338
        %v559 = vpop.f32.mrb[0].mxu0
        %v560 = vadd.f32 %v366, %v559
        %v561 = vpop.f32.mrb[0].mxu0
        %562 = vmatprep.mubr.f32.mxu0 0.0
        %563 = vmatmul.mubr.f32.gmra.mrb[0].mxu0 %v339
        %v564 = vpop.f32.mrb[0].mxu0
        %v565 = vadd.f32 %v366, %v564
        %v566 = vpop.f32.mrb[0].mxu0
        %567 = vmatprep.mubr.f32.mxu0 0.0
        %568 = vmatmul.mubr.f32.gmra.mrb[0].mxu0 %v340
        %v569 = vpop.f32.mrb[0].mxu0
        %v570 = vadd.f32 %v366, %v569
        %v571 = vpop.f32.mrb[0].mxu0
        %572 = vmatprep.mubr.f32.mxu0 0.0
        %573 = vmatmul.mubr.f32.gmra.mrb[0].mxu0 %v341
        %v574 = vpop.f32.mrb[0].mxu0
        %v575 = vadd.f32 %v366, %v574
        %v576 = vpop.f32.mrb[0].mxu0
        %577 = vmatprep.mubr.f32.mxu0 0.0
        %578 = vmatmul.mubr.f32.gmra.mrb[0].mxu0 %v342
        %v579 = vpop.f32.mrb[0].mxu0
        %v580 = vadd.f32 %v366, %v579
        %v581 = vpop.f32.mrb[0].mxu0
        %582 = vmatprep.mubr.f32.mxu0 0.0
        %583 = vmatmul.mubr.f32.gmra.mrb[0].mxu0 %v343
        %v584 = vpop.f32.mrb[0].mxu0
        %v585 = vadd.f32 %v366, %v584
        %v586 = vpop.f32.mrb[0].mxu0
        %587 = vmatprep.mubr.f32.mxu0 0.0
        %588 = vmatmul.mubr.f32.gmra.mrb[0].mxu0 %v344
        %v589 = vpop.f32.mrb[0].mxu0
        %v590 = vadd.f32 %v366, %v589
        %v591 = vpop.f32.mrb[0].mxu0
        %592 = vdwg.mxu0
        %593 = vst [vmem:[%s302] sm:$0xff] %v435
        %594 = vst [vmem:[%s302 + $0x8] sm:$0xff] %v440
        %595 = vst [vmem:[%s302 + $0x10] sm:$0xff] %v445
        %596 = vst [vmem:[%s302 + $0x18] sm:$0xff] %v450
        %597 = vst [vmem:[%s302 + $0x20] sm:$0xff] %v455
        %598 = vst [vmem:[%s302 + $0x28] sm:$0xff] %v460
        %599 = vst [vmem:[%s302 + $0x30] sm:$0xff] %v465
        %600 = vst [vmem:[%s302 + $0x38] sm:$0xff] %v470
        %601 = vst [vmem:[%s302 + $0x40] sm:$0xff] %v475
        %602 = vst [vmem:[%s302 + $0x48] sm:$0xff] %v480
        %603 = vst [vmem:[%s302 + $0x50] sm:$0xff] %v485
        %604 = vst [vmem:[%s302 + $0x58] sm:$0xff] %v490
        %605 = vst [vmem:[%s302 + $0x60] sm:$0xff] %v495
        %606 = vst [vmem:[%s302 + $0x68] sm:$0xff] %v500
        %607 = vst [vmem:[%s302 + $0x70] sm:$0xff] %v505
        %608 = vst [vmem:[%s302 + $0x78] sm:$0xff] %v510
        %609 = vst [vmem:[%s302 + $0x80] sm:$0xff] %v515
        %610 = vst [vmem:[%s302 + $0x88] sm:$0xff] %v520
        %611 = vst [vmem:[%s302 + $0x90] sm:$0xff] %v525
        %612 = vst [vmem:[%s302 + $0x98] sm:$0xff] %v530
        %613 = vst [vmem:[%s302 + $0xa0] sm:$0xff] %v535
        %614 = vst [vmem:[%s302 + $0xa8] sm:$0xff] %v540
        %615 = vst [vmem:[%s302 + $0xb0] sm:$0xff] %v545
        %616 = vst [vmem:[%s302 + $0xb8] sm:$0xff] %v550
        %617 = vst [vmem:[%s302 + $0xc0] sm:$0xff] %v555
        %618 = vst [vmem:[%s302 + $0xc8] sm:$0xff] %v560
        %619 = vst [vmem:[%s302 + $0xd0] sm:$0xff] %v565
        %620 = vst [vmem:[%s302 + $0xd8] sm:$0xff] %v570
        %621 = vst [vmem:[%s302 + $0xe0] sm:$0xff] %v575
        %622 = vst [vmem:[%s302 + $0xe8] sm:$0xff] %v580
        %623 = vst [vmem:[%s302 + $0xf0] sm:$0xff] %v585
        %624 = vst [vmem:[%s302 + $0xf8] sm:$0xff] %v590
        %v625 = vld [vmem:[#allocation7] sm:$0xff]
        %v626 = vld [vmem:[#allocation7 + $0x8] sm:$0xff]
        %v627 = vld [vmem:[#allocation7 + $0x10] sm:$0xff]
        %v628 = vld [vmem:[#allocation7 + $0x18] sm:$0xff]
        %v629 = vld [vmem:[#allocation7 + $0x20] sm:$0xff]
        %v630 = vld [vmem:[#allocation7 + $0x28] sm:$0xff]
        %v631 = vld [vmem:[#allocation7 + $0x30] sm:$0xff]
        %v632 = vld [vmem:[#allocation7 + $0x38] sm:$0xff]
        %v633 = vld [vmem:[#allocation7 + $0x40] sm:$0xff]
        %v634 = vld [vmem:[#allocation7 + $0x48] sm:$0xff]
        %v635 = vld [vmem:[#allocation7 + $0x50] sm:$0xff]
        %v636 = vld [vmem:[#allocation7 + $0x58] sm:$0xff]
        %v637 = vld [vmem:[#allocation7 + $0x60] sm:$0xff]
        %v638 = vld [vmem:[#allocation7 + $0x68] sm:$0xff]
        %v639 = vld [vmem:[#allocation7 + $0x70] sm:$0xff]
        %v640 = vld [vmem:[#allocation7 + $0x78] sm:$0xff]
        %v641 = vld [vmem:[#allocation7 + $0x80] sm:$0xff]
        %v642 = vld [vmem:[#allocation7 + $0x88] sm:$0xff]
        %v643 = vld [vmem:[#allocation7 + $0x90] sm:$0xff]
        %v644 = vld [vmem:[#allocation7 + $0x98] sm:$0xff]
        %v645 = vld [vmem:[#allocation7 + $0xa0] sm:$0xff]
        %v646 = vld [vmem:[#allocation7 + $0xa8] sm:$0xff]
        %v647 = vld [vmem:[#allocation7 + $0xb0] sm:$0xff]
        %v648 = vld [vmem:[#allocation7 + $0xb8] sm:$0xff]
        %v649 = vld [vmem:[#allocation7 + $0xc0] sm:$0xff]
        %v650 = vld [vmem:[#allocation7 + $0xc8] sm:$0xff]
        %v651 = vld [vmem:[#allocation7 + $0xd0] sm:$0xff]
        %v652 = vld [vmem:[#allocation7 + $0xd8] sm:$0xff]
        %v653 = vld [vmem:[#allocation7 + $0xe0] sm:$0xff]
        %v654 = vld [vmem:[#allocation7 + $0xe8] sm:$0xff]
        %v655 = vld [vmem:[#allocation7 + $0xf0] sm:$0xff]
        %v656 = vld [vmem:[#allocation7 + $0xf8] sm:$0xff]
        %v657 = vld [vmem:[%s4] sm:$0x3]
        %v659 = vlaneseq
        %v660 = vshrl.u32 %v659, 7
        %v661 = vsub.s32 0, %v660
        %v662 = vrot.slane %v657, %v661
        %v663 = vlaneseq
        %v664 = vshrl.u32 %v663, 7
        %v665 = vsub.s32 1, %v664
        %v666 = vrot.slane %v657, %v665
        %669 = vmatprep.subr.mxu0 %v626
        %670 = vmatpush1.msra.mxu0 %v625
        %671 = vmatprep.subr.mxu0 %v628
        %672 = vmatpush1.msra.mxu0 %v627
        %673 = vmatprep.subr.mxu0 %v630
        %674 = vmatpush1.msra.mxu0 %v629
        %675 = vmatprep.subr.mxu0 %v632
        %676 = vmatpush1.msra.mxu0 %v631
        %677 = vmatprep.subr.mxu0 %v634
        %678 = vmatpush1.msra.mxu0 %v633
        %679 = vmatprep.subr.mxu0 %v636
        %680 = vmatpush1.msra.mxu0 %v635
        %681 = vmatprep.subr.mxu0 %v638
        %682 = vmatpush1.msra.mxu0 %v637
        %683 = vmatprep.subr.mxu0 %v640
        %684 = vmatpush1.msra.mxu0 %v639
        %685 = vmatprep.subr.mxu0 %v642
        %686 = vmatpush1.msra.mxu0 %v641
        %687 = vmatprep.subr.mxu0 %v644
        %688 = vmatpush1.msra.mxu0 %v643
        %689 = vmatprep.subr.mxu0 %v646
        %690 = vmatpush1.msra.mxu0 %v645
        %691 = vmatprep.subr.mxu0 %v648
        %692 = vmatpush1.msra.mxu0 %v647
        %693 = vmatprep.subr.mxu0 %v650
        %694 = vmatpush1.msra.mxu0 %v649
        %695 = vmatprep.subr.mxu0 %v652
        %696 = vmatpush1.msra.mxu0 %v651
        %697 = vmatprep.subr.mxu0 %v654
        %698 = vmatpush1.msra.mxu0 %v653
        %699 = vmatprep.subr.mxu0 %v656
        %700 = vmatpush1.msra.mxu0 %v655
        %701 = vmatprep.subr.mxu0 0.0
        %702 = vmatpush1.msra.mxu0 0.0
        %703 = vmatprep.subr.mxu0 0.0
        %704 = vmatpush1.msra.mxu0 0.0
        %705 = vmatprep.subr.mxu0 0.0
        %706 = vmatpush1.msra.mxu0 0.0
        %707 = vmatprep.subr.mxu0 0.0
        %708 = vmatpush1.msra.mxu0 0.0
        %709 = vmatprep.subr.mxu0 0.0
        %710 = vmatpush1.msra.mxu0 0.0
        %711 = vmatprep.subr.mxu0 0.0
        %712 = vmatpush1.msra.mxu0 0.0
        %713 = vmatprep.subr.mxu0 0.0
        %714 = vmatpush1.msra.mxu0 0.0
        %715 = vmatprep.subr.mxu0 0.0
        %716 = vmatpush1.msra.mxu0 0.0
        %717 = vmatprep.subr.mxu0 0.0
        %718 = vmatpush1.msra.mxu0 0.0
        %719 = vmatprep.subr.mxu0 0.0
        %720 = vmatpush1.msra.mxu0 0.0
        %721 = vmatprep.subr.mxu0 0.0
        %722 = vmatpush1.msra.mxu0 0.0
        %723 = vmatprep.subr.mxu0 0.0
        %724 = vmatpush1.msra.mxu0 0.0
        %725 = vmatprep.subr.mxu0 0.0
        %726 = vmatpush1.msra.mxu0 0.0
        %727 = vmatprep.subr.mxu0 0.0
        %728 = vmatpush1.msra.mxu0 0.0
        %729 = vmatprep.subr.mxu0 0.0
        %730 = vmatpush1.msra.mxu0 0.0
        %731 = vmatprep.subr.mxu0 0.0
        %732 = vmatpush1.msra.mxu0 0.0
        %733 = vmatprep.mubr.f32.mxu0 0.0
        %734 = vmatmul.mubr.f32.gmra.mrb[0].mxu0 %v313
        %v735 = vpop.f32.mrb[0].mxu0
        %v736 = vadd.f32 %v662, %v735
        %v737 = vpop.f32.mrb[0].mxu0
        %v738 = vadd.f32 %v666, %v737
        %739 = vmatprep.mubr.f32.mxu0 0.0
        %740 = vmatmul.mubr.f32.gmra.mrb[0].mxu0 %v314
        %v741 = vpop.f32.mrb[0].mxu0
        %v742 = vadd.f32 %v662, %v741
        %v743 = vpop.f32.mrb[0].mxu0
        %v744 = vadd.f32 %v666, %v743
        %745 = vmatprep.mubr.f32.mxu0 0.0
        %746 = vmatmul.mubr.f32.gmra.mrb[0].mxu0 %v315
        %v747 = vpop.f32.mrb[0].mxu0
        %v748 = vadd.f32 %v662, %v747
        %v749 = vpop.f32.mrb[0].mxu0
        %v750 = vadd.f32 %v666, %v749
        %751 = vmatprep.mubr.f32.mxu0 0.0
        %752 = vmatmul.mubr.f32.gmra.mrb[0].mxu0 %v316
        %v753 = vpop.f32.mrb[0].mxu0
        %v754 = vadd.f32 %v662, %v753
        %v755 = vpop.f32.mrb[0].mxu0
        %v756 = vadd.f32 %v666, %v755
        %757 = vmatprep.mubr.f32.mxu0 0.0
        %758 = vmatmul.mubr.f32.gmra.mrb[0].mxu0 %v317
        %v759 = vpop.f32.mrb[0].mxu0
        %v760 = vadd.f32 %v662, %v759
        %v761 = vpop.f32.mrb[0].mxu0
        %v762 = vadd.f32 %v666, %v761
        %763 = vmatprep.mubr.f32.mxu0 0.0
        %764 = vmatmul.mubr.f32.gmra.mrb[0].mxu0 %v318
        %v765 = vpop.f32.mrb[0].mxu0
        %v766 = vadd.f32 %v662, %v765
        %v767 = vpop.f32.mrb[0].mxu0
        %v768 = vadd.f32 %v666, %v767
        %769 = vmatprep.mubr.f32.mxu0 0.0
        %770 = vmatmul.mubr.f32.gmra.mrb[0].mxu0 %v319
        %v771 = vpop.f32.mrb[0].mxu0
        %v772 = vadd.f32 %v662, %v771
        %v773 = vpop.f32.mrb[0].mxu0
        %v774 = vadd.f32 %v666, %v773
        %775 = vmatprep.mubr.f32.mxu0 0.0
        %776 = vmatmul.mubr.f32.gmra.mrb[0].mxu0 %v320
        %v777 = vpop.f32.mrb[0].mxu0
        %v778 = vadd.f32 %v662, %v777
        %v779 = vpop.f32.mrb[0].mxu0
        %v780 = vadd.f32 %v666, %v779
        %781 = vmatprep.mubr.f32.mxu0 0.0
        %782 = vmatmul.mubr.f32.gmra.mrb[0].mxu0 %v321
        %v783 = vpop.f32.mrb[0].mxu0
        %v784 = vadd.f32 %v662, %v783
        %v785 = vpop.f32.mrb[0].mxu0
        %v786 = vadd.f32 %v666, %v785
        %787 = vmatprep.mubr.f32.mxu0 0.0
        %788 = vmatmul.mubr.f32.gmra.mrb[0].mxu0 %v322
        %v789 = vpop.f32.mrb[0].mxu0
        %v790 = vadd.f32 %v662, %v789
        %v791 = vpop.f32.mrb[0].mxu0
        %v792 = vadd.f32 %v666, %v791
        %793 = vmatprep.mubr.f32.mxu0 0.0
        %794 = vmatmul.mubr.f32.gmra.mrb[0].mxu0 %v323
        %v795 = vpop.f32.mrb[0].mxu0
        %v796 = vadd.f32 %v662, %v795
        %v797 = vpop.f32.mrb[0].mxu0
        %v798 = vadd.f32 %v666, %v797
        %799 = vmatprep.mubr.f32.mxu0 0.0
        %800 = vmatmul.mubr.f32.gmra.mrb[0].mxu0 %v324
        %v801 = vpop.f32.mrb[0].mxu0
        %v802 = vadd.f32 %v662, %v801
        %v803 = vpop.f32.mrb[0].mxu0
        %v804 = vadd.f32 %v666, %v803
        %805 = vmatprep.mubr.f32.mxu0 0.0
        %806 = vmatmul.mubr.f32.gmra.mrb[0].mxu0 %v325
        %v807 = vpop.f32.mrb[0].mxu0
        %v808 = vadd.f32 %v662, %v807
        %v809 = vpop.f32.mrb[0].mxu0
        %v810 = vadd.f32 %v666, %v809
        %811 = vmatprep.mubr.f32.mxu0 0.0
        %812 = vmatmul.mubr.f32.gmra.mrb[0].mxu0 %v326
        %v813 = vpop.f32.mrb[0].mxu0
        %v814 = vadd.f32 %v662, %v813
        %v815 = vpop.f32.mrb[0].mxu0
        %v816 = vadd.f32 %v666, %v815
        %817 = vmatprep.mubr.f32.mxu0 0.0
        %818 = vmatmul.mubr.f32.gmra.mrb[0].mxu0 %v327
        %v819 = vpop.f32.mrb[0].mxu0
        %v820 = vadd.f32 %v662, %v819
        %v821 = vpop.f32.mrb[0].mxu0
        %v822 = vadd.f32 %v666, %v821
        %823 = vmatprep.mubr.f32.mxu0 0.0
        %824 = vmatmul.mubr.f32.gmra.mrb[0].mxu0 %v328
        %v825 = vpop.f32.mrb[0].mxu0
        %v826 = vadd.f32 %v662, %v825
        %v827 = vpop.f32.mrb[0].mxu0
        %v828 = vadd.f32 %v666, %v827
        %829 = vmatprep.mubr.f32.mxu0 0.0
        %830 = vmatmul.mubr.f32.gmra.mrb[0].mxu0 %v329
        %v831 = vpop.f32.mrb[0].mxu0
        %v832 = vadd.f32 %v662, %v831
        %v833 = vpop.f32.mrb[0].mxu0
        %v834 = vadd.f32 %v666, %v833
        %835 = vmatprep.mubr.f32.mxu0 0.0
        %836 = vmatmul.mubr.f32.gmra.mrb[0].mxu0 %v330
        %v837 = vpop.f32.mrb[0].mxu0
        %v838 = vadd.f32 %v662, %v837
        %v839 = vpop.f32.mrb[0].mxu0
        %v840 = vadd.f32 %v666, %v839
        %841 = vmatprep.mubr.f32.mxu0 0.0
        %842 = vmatmul.mubr.f32.gmra.mrb[0].mxu0 %v331
        %v843 = vpop.f32.mrb[0].mxu0
        %v844 = vadd.f32 %v662, %v843
        %v845 = vpop.f32.mrb[0].mxu0
        %v846 = vadd.f32 %v666, %v845
        %847 = vmatprep.mubr.f32.mxu0 0.0
        %848 = vmatmul.mubr.f32.gmra.mrb[0].mxu0 %v332
        %v849 = vpop.f32.mrb[0].mxu0
        %v850 = vadd.f32 %v662, %v849
        %v851 = vpop.f32.mrb[0].mxu0
        %v852 = vadd.f32 %v666, %v851
        %853 = vmatprep.mubr.f32.mxu0 0.0
        %854 = vmatmul.mubr.f32.gmra.mrb[0].mxu0 %v333
        %v855 = vpop.f32.mrb[0].mxu0
        %v856 = vadd.f32 %v662, %v855
        %v857 = vpop.f32.mrb[0].mxu0
        %v858 = vadd.f32 %v666, %v857
        %859 = vmatprep.mubr.f32.mxu0 0.0
        %860 = vmatmul.mubr.f32.gmra.mrb[0].mxu0 %v334
        %v861 = vpop.f32.mrb[0].mxu0
        %v862 = vadd.f32 %v662, %v861
        %v863 = vpop.f32.mrb[0].mxu0
        %v864 = vadd.f32 %v666, %v863
        %865 = vmatprep.mubr.f32.mxu0 0.0
        %866 = vmatmul.mubr.f32.gmra.mrb[0].mxu0 %v335
        %v867 = vpop.f32.mrb[0].mxu0
        %v868 = vadd.f32 %v662, %v867
        %v869 = vpop.f32.mrb[0].mxu0
        %v870 = vadd.f32 %v666, %v869
        %871 = vmatprep.mubr.f32.mxu0 0.0
        %872 = vmatmul.mubr.f32.gmra.mrb[0].mxu0 %v336
        %v873 = vpop.f32.mrb[0].mxu0
        %v874 = vadd.f32 %v662, %v873
        %v875 = vpop.f32.mrb[0].mxu0
        %v876 = vadd.f32 %v666, %v875
        %877 = vmatprep.mubr.f32.mxu0 0.0
        %878 = vmatmul.mubr.f32.gmra.mrb[0].mxu0 %v337
        %v879 = vpop.f32.mrb[0].mxu0
        %v880 = vadd.f32 %v662, %v879
        %v881 = vpop.f32.mrb[0].mxu0
        %v882 = vadd.f32 %v666, %v881
        %883 = vmatprep.mubr.f32.mxu0 0.0
        %884 = vmatmul.mubr.f32.gmra.mrb[0].mxu0 %v338
        %v885 = vpop.f32.mrb[0].mxu0
        %v886 = vadd.f32 %v662, %v885
        %v887 = vpop.f32.mrb[0].mxu0
        %v888 = vadd.f32 %v666, %v887
        %889 = vmatprep.mubr.f32.mxu0 0.0
        %890 = vmatmul.mubr.f32.gmra.mrb[0].mxu0 %v339
        %v891 = vpop.f32.mrb[0].mxu0
        %v892 = vadd.f32 %v662, %v891
        %v893 = vpop.f32.mrb[0].mxu0
        %v894 = vadd.f32 %v666, %v893
        %895 = vmatprep.mubr.f32.mxu0 0.0
        %896 = vmatmul.mubr.f32.gmra.mrb[0].mxu0 %v340
        %v897 = vpop.f32.mrb[0].mxu0
        %v898 = vadd.f32 %v662, %v897
        %v899 = vpop.f32.mrb[0].mxu0
        %v900 = vadd.f32 %v666, %v899
        %901 = vmatprep.mubr.f32.mxu0 0.0
        %902 = vmatmul.mubr.f32.gmra.mrb[0].mxu0 %v341
        %v903 = vpop.f32.mrb[0].mxu0
        %v904 = vadd.f32 %v662, %v903
        %v905 = vpop.f32.mrb[0].mxu0
        %v906 = vadd.f32 %v666, %v905
        %907 = vmatprep.mubr.f32.mxu0 0.0
        %908 = vmatmul.mubr.f32.gmra.mrb[0].mxu0 %v342
        %v909 = vpop.f32.mrb[0].mxu0
        %v910 = vadd.f32 %v662, %v909
        %v911 = vpop.f32.mrb[0].mxu0
        %v912 = vadd.f32 %v666, %v911
        %913 = vmatprep.mubr.f32.mxu0 0.0
        %914 = vmatmul.mubr.f32.gmra.mrb[0].mxu0 %v343
        %v915 = vpop.f32.mrb[0].mxu0
        %v916 = vadd.f32 %v662, %v915
        %v917 = vpop.f32.mrb[0].mxu0
        %v918 = vadd.f32 %v666, %v917
        %919 = vmatprep.mubr.f32.mxu0 0.0
        %920 = vmatmul.mubr.f32.gmra.mrb[0].mxu0 %v344
        %v921 = vpop.f32.mrb[0].mxu0
        %v922 = vadd.f32 %v662, %v921
        %v923 = vpop.f32.mrb[0].mxu0
        %v924 = vadd.f32 %v666, %v923
        %925 = vdwg.mxu0
        %926 = vst [vmem:[%s309] sm:$0xff] %v736
        %927 = vst [vmem:[%s309 + $0x8] sm:$0xff] %v738
        %928 = vst [vmem:[%s309 + $0x10] sm:$0xff] %v742
        %929 = vst [vmem:[%s309 + $0x18] sm:$0xff] %v744
        %930 = vst [vmem:[%s309 + $0x20] sm:$0xff] %v748
        %931 = vst [vmem:[%s309 + $0x28] sm:$0xff] %v750
        %932 = vst [vmem:[%s309 + $0x30] sm:$0xff] %v754
        %933 = vst [vmem:[%s309 + $0x38] sm:$0xff] %v756
        %934 = vst [vmem:[%s309 + $0x40] sm:$0xff] %v760
        %935 = vst [vmem:[%s309 + $0x48] sm:$0xff] %v762
        %936 = vst [vmem:[%s309 + $0x50] sm:$0xff] %v766
        %937 = vst [vmem:[%s309 + $0x58] sm:$0xff] %v768
        %938 = vst [vmem:[%s309 + $0x60] sm:$0xff] %v772
        %939 = vst [vmem:[%s309 + $0x68] sm:$0xff] %v774
        %940 = vst [vmem:[%s309 + $0x70] sm:$0xff] %v778
        %941 = vst [vmem:[%s309 + $0x78] sm:$0xff] %v780
        %942 = vst [vmem:[%s309 + $0x80] sm:$0xff] %v784
        %943 = vst [vmem:[%s309 + $0x88] sm:$0xff] %v786
        %944 = vst [vmem:[%s309 + $0x90] sm:$0xff] %v790
        %945 = vst [vmem:[%s309 + $0x98] sm:$0xff] %v792
        %946 = vst [vmem:[%s309 + $0xa0] sm:$0xff] %v796
        %947 = vst [vmem:[%s309 + $0xa8] sm:$0xff] %v798
        %948 = vst [vmem:[%s309 + $0xb0] sm:$0xff] %v802
        %949 = vst [vmem:[%s309 + $0xb8] sm:$0xff] %v804
        %950 = vst [vmem:[%s309 + $0xc0] sm:$0xff] %v808
        %951 = vst [vmem:[%s309 + $0xc8] sm:$0xff] %v810
        %952 = vst [vmem:[%s309 + $0xd0] sm:$0xff] %v814
        %953 = vst [vmem:[%s309 + $0xd8] sm:$0xff] %v816
        %954 = vst [vmem:[%s309 + $0xe0] sm:$0xff] %v820
        %955 = vst [vmem:[%s309 + $0xe8] sm:$0xff] %v822
        %956 = vst [vmem:[%s309 + $0xf0] sm:$0xff] %v826
        %957 = vst [vmem:[%s309 + $0xf8] sm:$0xff] %v828
        %958 = vst [vmem:[%s309 + $0x100] sm:$0xff] %v832
        %959 = vst [vmem:[%s309 + $0x108] sm:$0xff] %v834
        %960 = vst [vmem:[%s309 + $0x110] sm:$0xff] %v838
        %961 = vst [vmem:[%s309 + $0x118] sm:$0xff] %v840
        %962 = vst [vmem:[%s309 + $0x120] sm:$0xff] %v844
        %963 = vst [vmem:[%s309 + $0x128] sm:$0xff] %v846
        %964 = vst [vmem:[%s309 + $0x130] sm:$0xff] %v850
        %965 = vst [vmem:[%s309 + $0x138] sm:$0xff] %v852
        %966 = vst [vmem:[%s309 + $0x140] sm:$0xff] %v856
        %967 = vst [vmem:[%s309 + $0x148] sm:$0xff] %v858
        %968 = vst [vmem:[%s309 + $0x150] sm:$0xff] %v862
        %969 = vst [vmem:[%s309 + $0x158] sm:$0xff] %v864
        %970 = vst [vmem:[%s309 + $0x160] sm:$0xff] %v868
        %971 = vst [vmem:[%s309 + $0x168] sm:$0xff] %v870
        %972 = vst [vmem:[%s309 + $0x170] sm:$0xff] %v874
        %973 = vst [vmem:[%s309 + $0x178] sm:$0xff] %v876
        %974 = vst [vmem:[%s309 + $0x180] sm:$0xff] %v880
        %975 = vst [vmem:[%s309 + $0x188] sm:$0xff] %v882
        %976 = vst [vmem:[%s309 + $0x190] sm:$0xff] %v886
        %977 = vst [vmem:[%s309 + $0x198] sm:$0xff] %v888
        %978 = vst [vmem:[%s309 + $0x1a0] sm:$0xff] %v892
        %979 = vst [vmem:[%s309 + $0x1a8] sm:$0xff] %v894
        %980 = vst [vmem:[%s309 + $0x1b0] sm:$0xff] %v898
        %981 = vst [vmem:[%s309 + $0x1b8] sm:$0xff] %v900
        %982 = vst [vmem:[%s309 + $0x1c0] sm:$0xff] %v904
        %983 = vst [vmem:[%s309 + $0x1c8] sm:$0xff] %v906
        %984 = vst [vmem:[%s309 + $0x1d0] sm:$0xff] %v910
        %985 = vst [vmem:[%s309 + $0x1d8] sm:$0xff] %v912
        %986 = vst [vmem:[%s309 + $0x1e0] sm:$0xff] %v916
        %987 = vst [vmem:[%s309 + $0x1e8] sm:$0xff] %v918
        %988 = vst [vmem:[%s309 + $0x1f0] sm:$0xff] %v922
        %989 = vst [vmem:[%s309 + $0x1f8] sm:$0xff] %v924
        %s990 = sand.u32 %s146, 1
        %s991 = scalar_lea.sflag [#allocation4], %s990
        %s992 = sand.u32 %s146, 1
        %s993 = smul.addr %s992, 256
        %s994 = scalar_lea.vmem [#allocation8], %s993
        %s995 = sand.u32 %s172, 1
        %s996 = scalar_lea.sflag [#allocation10], %s995
        %s997 = sand.u32 %s172, 1
        %s998 = smul.addr %s997, 512
        %s999 = scalar_lea.vmem [#allocation9], %s998
        // Predicated region
        $region53: #{tpu_custom_call.1} parent=39 // pred_check
          %p1000 = pneg %p156
        $region54: #{tpu_custom_call.1} parent=39 // pred_check_branch
          %1002 = sbr.rel (%p1000) target = $region56
        $region55: #{tpu_custom_call.1} parent=39 // pred_region
          %s1003 = smul.u32 32, %s28
          %s1005 = ssub.s32 4096, 4096
          %1006 = vsyncadd %s991, %s1005
          %s1007 = smul.addr %s1003, 128
          %s1008 = scalar_lea.hbm %s5, %s1007
          %s1009 = sshll.u32 %s994, 4
          %s1010 = int_to_ptr.vmem [resolvable:$true] %s1009
          %1015 = dma.vmem_to_hbm [thread:$0]  %s1010, 4096, %s1008, %s991, 128, 128, 8
        $region56: #{tpu_custom_call.1} parent=39 // pred_fallthru
          _
        // Predicated region
        $region57: #{tpu_custom_call.1} parent=39 // pred_check
          %p1016 = pneg %p182
        $region58: #{tpu_custom_call.1} parent=39 // pred_check_branch
          %1018 = sbr.rel (%p1016) target = $region60
        $region59: #{tpu_custom_call.1} parent=39 // pred_region
          %s1019 = smul.u32 32, %s28
          %s1021 = ssub.s32 8192, 8192
          %1022 = vsyncadd %s996, %s1021
          %s1023 = smul.addr %s1019, 2
          %s1024 = smul.addr %s1023, 128
          %s1025 = scalar_lea.hbm %s6, %s1024
          %s1026 = sshll.u32 %s999, 4
          %s1027 = int_to_ptr.vmem [resolvable:$true] %s1026
          %1032 = dma.vmem_to_hbm [thread:$0]  %s1027, 8192, %s1025, %s996, 256, 256, 16
        $region60: #{tpu_custom_call.1} parent=39 // pred_fallthru
          _
      $region40: #{tpu_custom_call.1} parent=5 // pred_fallthru
        _
      %p1033 = scmp.le.s32.totalorder 2, %s23
      // Predicated region
      $region61: #{tpu_custom_call.1} parent=5 // pred_check
        %p1034 = pneg %p1033
      $region62: #{tpu_custom_call.1} parent=5 // pred_check_branch
        %1036 = sbr.rel (%p1034) target = $region64
      $region63: #{tpu_custom_call.1} parent=5 // pred_region
        %s1037 = ssub.s32 %s23, 2
        // Predicated region
        $region65: #{tpu_custom_call.1} parent=63 // pred_check
          %p1038 = pneg %p162
        $region66: #{tpu_custom_call.1} parent=63 // pred_check_branch
          %1040 = sbr.rel (%p1038) target = $region68
        $region67: #{tpu_custom_call.1} parent=63 // pred_region
          %s1041 = sand.u32 %s147, 1
          %s1042 = scalar_lea.sflag [#allocation4], %s1041
          %s1043 = sand.u32 %s147, 1
          %s1044 = smul.addr %s1043, 256
          %s1045 = scalar_lea.vmem [#allocation8], %s1044
          %1046 = dma.done %s1042, 4096
        $region68: #{tpu_custom_call.1} parent=63 // pred_fallthru
          _
        // Predicated region
        $region69: #{tpu_custom_call.1} parent=63 // pred_check
          %p1047 = pneg %p188
        $region70: #{tpu_custom_call.1} parent=63 // pred_check_branch
          %1049 = sbr.rel (%p1047) target = $region72
        $region71: #{tpu_custom_call.1} parent=63 // pred_region
          %s1050 = sand.u32 %s173, 1
          %s1051 = scalar_lea.sflag [#allocation10], %s1050
          %s1052 = sand.u32 %s173, 1
          %s1053 = smul.addr %s1052, 512
          %s1054 = scalar_lea.vmem [#allocation9], %s1053
          %1055 = dma.done %s1051, 8192
        $region72: #{tpu_custom_call.1} parent=63 // pred_fallthru
          _
      $region64: #{tpu_custom_call.1} parent=5 // pred_fallthru
        _
    $region6: #{tpu_custom_call.1} parent=1 // loop_footer
      %s27 = sadd.s32 1, %s23
    $region7: #{tpu_custom_call.1} parent=1 // loop_footer_branch
      %22 = sbr.rel target = $region3
    $region8: #{tpu_custom_call.1} parent=1 // loop_exit
      _
    %1056 = vsyncpa [#allocation3], 1
    %s1057 = scalar_lea.sflag [#allocation3], 1
    %1058 = vsyncpa %s1057, 1
    %1059 = vsyncpa [#allocation6], 1
    %1060 = vsyncpa [#allocation4], 1
    %s1061 = scalar_lea.sflag [#allocation4], 1
    %1062 = vsyncpa %s1061, 1
    %1063 = vsyncpa [#allocation10], 1
    %s1064 = scalar_lea.sflag [#allocation10], 1
    %1065 = vsyncpa %s1064, 1

</llo_original>
